<compile_context>
chip_gen: v7x
topology: tpu7x:2x2x1
jax: 0.10.0
libtpu: 0.0.40
codegen_flags: <defaults>
</compile_context>

<pallas_src>
import functools
import math

import jax
import jax.numpy as jnp
from jax.experimental import pallas as pl
from jax.experimental.pallas import tpu as pltpu

_VMEM_LIMIT = 32 * 1024 * 1024       # explicit: v5e scoped default is only 16 MiB
_BASE_TILE_ROWS = 1024               # 1024 rows x 512 lanes x 4 B = 2 MiB / block
_BASE_STRIP_ROWS = 128               # 128 x 512 x 4 B = 256 KiB accumulator
_SMALL_INPUT_ELEMENTS = 1 << 20      # below this, plain fused jnp wins


def _cdiv(a, b):
    return -(-a // b)


def _round_up(x, m):
    return ((x + m - 1) // m) * m


@functools.lru_cache(maxsize=1)
def _chip_config():
    """Returns (core_splits, max_tile_rows_at_512_lanes, input_buffer_count)."""
    kind = ""
    try:
        kind = jax.devices()[0].device_kind.lower()
    except Exception:
        pass

    n_cores = None
    try:  # Prefer the explicit hardware query when available.
        info = pltpu.get_tpu_info()
        for attr in ("num_cores", "num_tensorcores", "tensorcore_count",
                     "cores_per_chip", "num_cores_per_chip"):
            val = getattr(info, attr, None)
            if val:
                n_cores = int(val)
                break
    except Exception:
        pass
    if n_cores is None:
        # v4 / v5p (megacore) and v7x (dual TC) benefit from a 2-way split;
        # single-TensorCore v5e / v6e do not (it would just be a serial loop).
        dual = any(s in kind for s in ("v7", "v4", "v5p", "v5 p"))
        n_cores = 2 if dual else 1
    n_cores = max(1, min(2, n_cores))

    is_v7 = "v7" in kind
    is_v6 = ("v6" in kind) and not is_v7
    # v6e (128 MiB VMEM, 1.4 TB/s): 4 MiB blocks buy the last 1-2% of roofline.
    # v5e (16 MiB scoped default) and v7x (64 MiB VMEM): stay at 2 MiB blocks.
    max_rows = 2048 if is_v6 else _BASE_TILE_ROWS
    # v7x: 3.2 TB/s drains a 2 MiB block in <1 us, so a third input buffer hides
    # per-grid-step overhead; ample VMEM headroom for it.
    in_buffers = 3 if is_v7 else 2
    return n_cores, max_rows, in_buffers


def _input_spec(block_shape, index_map, n_buffers):
    """BlockSpec with optional deeper multi-buffering (v7x), safe fallback."""
    if n_buffers != 2:
        try:
            return pl.BlockSpec(block_shape, index_map,
                                pipeline_mode=pl.Buffered(n_buffers))
        except Exception:
            pass
    return pl.BlockSpec(block_shape, index_map)


def _focal_elementwise(p, t, alpha, gamma):
    """focal = alpha * (1 - exp(-(p-t)^2))^gamma * (p-t)^2, computed in f32."""
    p = p.astype(jnp.float32)
    t = t.astype(jnp.float32)
    diff = p - t
    ce = diff * diff                      # F.mse_loss(..., reduction='none')
    pt = jnp.exp(-ce)
    omp = 1.0 - pt
    g = float(gamma)
    if g == 0.0:
        w = jnp.ones_like(omp)
    elif g == int(g) and 0 < int(g) <= 8:
        # Small integer gamma (incl. the default 2.0): unrolled VPU multiplies.
        w = omp
        for _ in range(int(g) - 1):
            w = w * omp
    else:
        # Non-integer gamma: generic pow; guard base == 0 so exp/log can't NaN.
        w = jnp.where(omp > 0.0,
                      jnp.power(omp, jnp.float32(g)),
                      jnp.float32(0.0))
    return jnp.float32(alpha) * w * ce


def _focal_none_kernel(pred_ref, tgt_ref, out_ref, *, alpha, gamma):
    out_ref[...] = _focal_elementwise(
        pred_ref[...], tgt_ref[...], alpha, gamma).astype(out_ref.dtype)


def _focal_reduce_kernel(pred_ref, tgt_ref, out_ref, acc_ref, *,
                         alpha, gamma, tile_rows, strip_rows,
                         tiles_per_split, rows_total, ragged):
    t = pl.program_id(1)

    @pl.when(t == 0)
    def _():
        acc_ref[...] = jnp.zeros_like(acc_ref)

    # Logical (unclamped) first row of this block; used only for masking.
    block_row0 = (pl.program_id(0) * tiles_per_split + t) * tile_rows
    n_strips = tile_rows // strip_rows

    def strip_body(s, carry):
        r0 = pl.multiple_of(s * strip_rows, strip_rows)
        f = _focal_elementwise(pred_ref[pl.ds(r0, strip_rows), :],
                               tgt_ref[pl.ds(r0, strip_rows), :],
                               alpha, gamma)
        if ragged:
            # Zero out garbage rows read past the end of the array (and whole
            # dead blocks in the last split). Statically removed when aligned.
            row_ids = (jax.lax.broadcasted_iota(jnp.int32, f.shape, 0)
                       + block_row0 + r0)
            f = jnp.where(row_ids < rows_total, f, 0.0)
        acc_ref[...] += f
        return carry

    jax.lax.fori_loop(0, n_strips, strip_body, 0, unroll=True)

    @pl.when(t == tiles_per_split - 1)
    def _():
        # Single small XLU reduce per core at the very end.
        out_ref[...] = jnp.full(out_ref.shape, jnp.sum(acc_ref[...]),
                                dtype=out_ref.dtype)


def focal_loss(predictions, targets, *, alpha=1.0, gamma=2.0,
               reduction="mean", min_pallas_elements=_SMALL_INPUT_ELEMENTS):
    """JAX/Pallas equivalent of FocalLoss.forward (MSE-based focal loss)."""
    assert predictions.shape == targets.shape
    if reduction not in ("mean", "sum", "none"):
        raise ValueError(f"unknown reduction: {reduction}")
    # alpha / gamma must be static Python numbers (specialized into the kernel).
    alpha = float(alpha)
    gamma = float(gamma)

    orig_shape = predictions.shape
    total = math.prod(orig_shape) if orig_shape else 1
    out_dtype = jnp.promote_types(predictions.dtype, targets.dtype)

    # Small-input fast path: XLA fusion of a handful of elementwise ops beats
    # the fixed pallas_call pipeline overhead.
    if total == 0 or total < min_pallas_elements:
        fl = _focal_elementwise(predictions, targets, alpha, gamma)
        if reduction == "mean":
            return jnp.mean(fl).astype(out_dtype)
        if reduction == "sum":
            return jnp.sum(fl).astype(out_dtype)
        return fl.astype(out_dtype)

    n_splits_hw, base_rows, in_buffers = _chip_config()

    # ---- Build a lane-dense 2D slab without copying whenever possible. ------
    # A reshape of a contiguous array is free; jnp.pad is a full extra HBM
    # round trip, so it is only used when `total` is not a multiple of 128
    # (and then pads < 128 zero elements, which contribute exactly 0).
    lanes = None
    for cand in (512, 256, 128):
        if total % cand == 0:
            lanes = cand
            break
    flat_p = predictions.reshape(total)
    flat_t = targets.reshape(total)
    padded = False
    if lanes is None:
        lanes = 128
        padded_total = _round_up(total, lanes)
        flat_p = jnp.pad(flat_p, (0, padded_total - total))
        flat_t = jnp.pad(flat_t, (0, padded_total - total))
        padded = True
    else:
        padded_total = total
    rows = padded_total // lanes
    pred2d = flat_p.reshape(rows, lanes)
    tgt2d = flat_t.reshape(rows, lanes)

    # dtype-aware sublane granularity: f32 -> 8, bf16/f16 -> 16, int8/fp8 -> 32.
    itemsize = min(jnp.dtype(predictions.dtype).itemsize,
                   jnp.dtype(targets.dtype).itemsize)
    sub = max(8, 32 // max(1, itemsize))

    lane_factor = 512 // lanes
    row_cap = base_rows * lane_factor            # ~2 MiB (4 MiB v6e) f32 blocks
    strip_cap = _BASE_STRIP_ROWS * lane_factor   # ~256 KiB f32 accumulator

    if reduction == "none":
        tile_rows = min(row_cap, _round_up(rows, sub))
        n_tiles = _cdiv(rows, tile_rows)
        in_spec = _input_spec((tile_rows, lanes), lambda i: (i, 0), in_buffers)
        out_spec = pl.BlockSpec((tile_rows, lanes), lambda i: (i, 0))
        out = pl.pallas_call(
            functools.partial(_focal_none_kernel, alpha=alpha, gamma=gamma),
            out_shape=jax.ShapeDtypeStruct((rows, lanes), out_dtype),
            grid_spec=pltpu.PrefetchScalarGridSpec(
                num_scalar_prefetch=0,
                grid=(n_tiles,),
                in_specs=[in_spec, in_spec],
                out_specs=out_spec,
            ),
            compiler_params=pltpu.CompilerParams(
                dimension_semantics=("parallel",),
                vmem_limit_bytes=_VMEM_LIMIT),
        )(pred2d, tgt2d)
        if padded:
            return out.reshape(-1)[:total].reshape(orig_shape)
        return out.reshape(orig_shape)

    divisor = float(total) if reduction == "mean" else 1.0

    # Tile rows are either <= strip_cap (single strip) or a multiple of
    # strip_cap, so the (strip_rows, lanes) accumulator divides the block.
    if rows <= strip_cap:
        tile_rows = _round_up(rows, sub)
    else:
        tile_rows = min(row_cap, _round_up(rows, strip_cap))
    strip_rows = min(strip_cap, tile_rows)

    total_tiles = _cdiv(rows, tile_rows)
    n_splits = max(1, min(n_splits_hw, total_tiles))
    tiles_per_split = _cdiv(total_tiles, n_splits)
    # Ragged edge: last tile overhangs `rows` and/or the last split holds tiles
    # past the end; both are masked in-kernel.  Aligned shapes compile the mask
    # out entirely.
    ragged = (n_splits * tiles_per_split * tile_rows) != rows
    last_tile = total_tiles - 1

    def in_index(p, t):
        # Clamp so fully-dead tiles (total_tiles % n_splits != 0) simply
        # re-read the last in-bounds tile; their contribution is masked to 0.
        return (jnp.minimum(p * tiles_per_split + t, last_tile), 0)

    in_spec = _input_spec((tile_rows, lanes), in_index, in_buffers)

    out = pl.pallas_call(
        functools.partial(
            _focal_reduce_kernel, alpha=alpha, gamma=gamma,
            tile_rows=tile_rows, strip_rows=strip_rows,
            tiles_per_split=tiles_per_split, rows_total=rows, ragged=ragged),
        out_shape=jax.ShapeDtypeStruct((n_splits, 8, 128), jnp.float32),
        grid_spec=pltpu.PrefetchScalarGridSpec(
            num_scalar_prefetch=0,
            grid=(n_splits, tiles_per_split),
            in_specs=[in_spec, in_spec],
            out_specs=pl.BlockSpec((1, 8, 128), lambda p, t: (p, 0, 0)),
            scratch_shapes=[pltpu.VMEM((strip_rows, lanes), jnp.float32)],
        ),
        compiler_params=pltpu.CompilerParams(
            dimension_semantics=("parallel", "arbitrary"),
            vmem_limit_bytes=_VMEM_LIMIT),
    )(pred2d, tgt2d)

    partials = out[:, 0, 0]                      # one partial sum per split
    return (jnp.sum(partials) / jnp.float32(divisor)).astype(out_dtype)


def _reference(predictions, targets, alpha=1.0, gamma=2.0, reduction="mean"):
    ce = (predictions - targets) ** 2
    pt = jnp.exp(-ce)
    fl = alpha * (1.0 - pt) ** gamma * ce
    if reduction == "mean":
        return fl.mean()
    if reduction == "sum":
        return fl.sum()
    return fl


if __name__ == "__main__":
    key = jax.random.PRNGKey(0)
    k1, k2 = jax.random.split(key)

    # Small shape from the module spec: [batch, time, features].
    batch, time, features = 2, 8, 32
    predictions = jax.random.normal(k1, (batch, time, features), jnp.float32)
    targets = jax.random.normal(k2, (batch, time, features), jnp.float32)

    # 1) Default API on the small input (routes to the fused-jnp fast path).
    loss = jax.block_until_ready(focal_loss(predictions, targets))
    ref = _reference(predictions, targets)
    assert jnp.allclose(loss, ref, rtol=1e-5, atol=1e-6), (loss, ref)

    # 2) Force the Pallas kernels on the same small shape; check all reductions.
    for red, rtol, atol in (("mean", 1e-5, 1e-6),
                            ("sum", 1e-5, 1e-5),
                            ("none", 1e-5, 1e-6)):
        got = jax.block_until_ready(
            focal_loss(predictions, targets, reduction=red,
                       min_pallas_elements=0))
        want = _reference(predictions, targets, reduction=red)
        assert got.shape == want.shape, (red, got.shape, want.shape)
        assert jnp.allclose(got, want, rtol=rtol, atol=atol), (red, got, want)

    # 3) Larger / ragged shapes exercising multi-strip blocks, the in-kernel
    #    row mask, narrower lane slabs and the pad-only-when-unaligned path.
    for i, shape in enumerate(((8, 96, 160),   # 122880 elems: 512-lane slab, ragged rows
                               (3, 40, 96),    # 11520 elems: 256-lane slab
                               (2, 7, 33))):   # 462 elems: needs a <128-elem pad
        kk1, kk2 = jax.random.split(jax.random.PRNGKey(i + 1), 2)
        p = jax.random.normal(kk1, shape, jnp.float32)
        t = jax.random.normal(kk2, shape, jnp.float32)
        for red in ("mean", "sum", "none"):
            got = jax.block_until_ready(
                focal_loss(p, t, reduction=red, min_pallas_elements=0))
            want = _reference(p, t, reduction=red)
            assert got.shape == want.shape, (shape, red, got.shape, want.shape)
            assert jnp.allclose(got, want, rtol=1e-4, atol=1e-5), (shape, red)

    print("KERNEL_OK")
</pallas_src>

<mosaic_0001>
module attributes {stable_mosaic.version = 11 : i64} {
  func.func @_focal_reduce_kernel(%arg0: i32, %arg1: i32, %arg2: memref<8x512xf32, #tpu.memory_space<vmem>>, %arg3: memref<8x512xf32, #tpu.memory_space<vmem>>, %arg4: memref<1x8x128xf32, #tpu.memory_space<vmem>>, %arg5: memref<8x512xf32, #tpu.memory_space<vmem>>) attributes {dimension_semantics = [#tpu.dimension_semantics<parallel>, #tpu.dimension_semantics<arbitrary>], iteration_bounds = array<i64: 1, 1>, scalar_prefetch = 0 : i64, scratch_operands = 1 : i64, tpu.core_type = #tpu.core_type<tc>, window_params = [{transform_indices = @transform_0, window_bounds = array<i64: 8, 512>}, {transform_indices = @transform_1, window_bounds = array<i64: 8, 512>}, {transform_indices = @transform_2, window_bounds = array<i64: 1, 8, 128>}]} {
    %c0_i32 = arith.constant 0 : i32
    %0 = arith.cmpi eq, %arg1, %c0_i32 : i32
    %1 = arith.extui %0 : i1 to i32
    %c0_i32_0 = arith.constant 0 : i32
    %2 = arith.cmpi ne, %1, %c0_i32_0 : i32
    scf.if %2 {
      %cst_15 = arith.constant 0.000000e+00 : f32
      %38 = vector.broadcast %cst_15 : f32 to vector<8x512xf32>
      %c0_16 = arith.constant 0 : index
      %c0_17 = arith.constant 0 : index
      %39 = vector.load %arg5[%c0_16, %c0_17] : memref<8x512xf32, #tpu.memory_space<vmem>>, vector<8x512xf32>
      tpu.vector_store %arg5[%c0_16, %c0_17], %38 {strides = array<i32>} : memref<8x512xf32, #tpu.memory_space<vmem>>, vector<8x512xf32>,
    } else {
    }
    %c1_i32 = arith.constant 1 : i32
    %3 = arith.muli %arg0, %c1_i32 : i32
    %4 = arith.addi %3, %arg1 : i32
    %c8_i32 = arith.constant 8 : i32
    %5 = arith.muli %4, %c8_i32 : i32
    %c0_i32_1 = arith.constant 0 : i32
    %c8_i32_2 = arith.constant 8 : i32
    %6 = arith.muli %c0_i32_1, %c8_i32_2 : i32
    %7 = tpu.assume_multiple %6, 8 : i32
    %8 = arith.index_cast %7 : i32 to index
    %c0 = arith.constant 0 : index
    %9 = vector.load %arg2[%8, %c0] : memref<8x512xf32, #tpu.memory_space<vmem>>, vector<8x512xf32>
    %10 = arith.index_cast %7 : i32 to index
    %c0_3 = arith.constant 0 : index
    %11 = vector.load %arg3[%10, %c0_3] : memref<8x512xf32, #tpu.memory_space<vmem>>, vector<8x512xf32>
    %12 = arith.subf %9, %11 : vector<8x512xf32>
    %13 = arith.mulf %12, %12 : vector<8x512xf32>
    %cst = arith.constant 0.000000e+00 : f32
    %14 = vector.broadcast %cst : f32 to vector<8x512xf32>
    %15 = arith.subf %14, %13 : vector<8x512xf32>
    %16 = math.exp %15 : vector<8x512xf32>
    %cst_4 = arith.constant 1.000000e+00 : f32
    %17 = vector.broadcast %cst_4 : f32 to vector<8x512xf32>
    %18 = arith.subf %17, %16 : vector<8x512xf32>
    %19 = arith.mulf %18, %18 : vector<8x512xf32>
    %cst_5 = arith.constant 1.000000e+00 : f32
    %20 = vector.broadcast %cst_5 : f32 to vector<8x512xf32>
    %21 = arith.mulf %20, %19 : vector<8x512xf32>
    %22 = arith.mulf %21, %13 : vector<8x512xf32>
    %23 = tpu.iota {dimensions = array<i32: 0>} : vector<8x512xi32>
    %24 = vector.broadcast %5 : i32 to vector<8x512xi32>
    %25 = arith.addi %23, %24 : vector<8x512xi32>
    %26 = vector.broadcast %7 : i32 to vector<8x512xi32>
    %27 = arith.addi %25, %26 : vector<8x512xi32>
    %c1_i32_6 = arith.constant 1 : i32
    %28 = vector.broadcast %c1_i32_6 : i32 to vector<8x512xi32>
    %29 = arith.cmpi slt, %27, %28 : vector<8x512xi32>
    %cst_7 = arith.constant 0.000000e+00 : f32
    %30 = vector.broadcast %cst_7 : f32 to vector<8x512xf32>
    %31 = arith.select %29, %22, %30 : vector<8x512xi1>, vector<8x512xf32>
    %c0_8 = arith.constant 0 : index
    %c0_9 = arith.constant 0 : index
    %32 = vector.load %arg5[%c0_8, %c0_9] : memref<8x512xf32, #tpu.memory_space<vmem>>, vector<8x512xf32>
    %33 = arith.addf %32, %31 : vector<8x512xf32>
    %c0_10 = arith.constant 0 : index
    %c0_11 = arith.constant 0 : index
    %34 = vector.load %arg5[%c0_10, %c0_11] : memref<8x512xf32, #tpu.memory_space<vmem>>, vector<8x512xf32>
    tpu.vector_store %arg5[%c0_10, %c0_11], %33 {strides = array<i32>} : memref<8x512xf32, #tpu.memory_space<vmem>>, vector<8x512xf32>,
    %c1_i32_12 = arith.constant 1 : i32
    %c0_i32_13 = arith.constant 0 : i32
    %35 = arith.cmpi eq, %arg1, %c0_i32_13 : i32
    %36 = arith.extui %35 : i1 to i32
    %c0_i32_14 = arith.constant 0 : i32
    %37 = arith.cmpi ne, %36, %c0_i32_14 : i32
    scf.if %37 {
      %c0_15 = arith.constant 0 : index
      %c0_16 = arith.constant 0 : index
      %38 = vector.load %arg5[%c0_15, %c0_16] : memref<8x512xf32, #tpu.memory_space<vmem>>, vector<8x512xf32>
      %39 = vector.shape_cast %38 : vector<8x512xf32> to vector<1x8x512xf32>
      %cst_17 = arith.constant dense<0.000000e+00> : vector<1xf32>
      %40 = vector.multi_reduction <add>, %39, %cst_17 [1, 2] : vector<1x8x512xf32> to vector<1xf32>
      %41 = vector.shape_cast %40 : vector<1xf32> to vector<1x1x1xf32>
      %42 = vector.extract %41[0, 0, 0] : f32 from vector<1x1x1xf32>
      %43 = vector.broadcast %42 : f32 to vector<1x8x128xf32>
      %c0_18 = arith.constant 0 : index
      %c0_19 = arith.constant 0 : index
      %c0_20 = arith.constant 0 : index
      %44 = vector.load %arg4[%c0_18, %c0_19, %c0_20] : memref<1x8x128xf32, #tpu.memory_space<vmem>>, vector<1x8x128xf32>
      tpu.vector_store %arg4[%c0_18, %c0_19, %c0_20], %43 {strides = array<i32>} : memref<1x8x128xf32, #tpu.memory_space<vmem>>, vector<1x8x128xf32>,
    } else {
    }
    return
  }
  func.func @transform_0(%arg0: i32, %arg1: i32) -> (i32, i32) {
    %c1_i32 = arith.constant 1 : i32
    %0 = arith.muli %arg0, %c1_i32 : i32
    %1 = arith.addi %0, %arg1 : i32
    %c0_i32 = arith.constant 0 : i32
    %2 = arith.minsi %1, %c0_i32 : i32
    %c0_i32_0 = arith.constant 0 : i32
    %c0_i32_1 = arith.constant 0 : i32
    return %2, %c0_i32_0 : i32, i32
  }
  func.func @transform_1(%arg0: i32, %arg1: i32) -> (i32, i32) {
    %c1_i32 = arith.constant 1 : i32
    %0 = arith.muli %arg0, %c1_i32 : i32
    %1 = arith.addi %0, %arg1 : i32
    %c0_i32 = arith.constant 0 : i32
    %2 = arith.minsi %1, %c0_i32 : i32
    %c0_i32_0 = arith.constant 0 : i32
    %c0_i32_1 = arith.constant 0 : i32
    return %2, %c0_i32_0 : i32, i32
  }
  func.func @transform_2(%arg0: i32, %arg1: i32) -> (i32, i32, i32) {
    %c0_i32 = arith.constant 0 : i32
    %c0_i32_0 = arith.constant 0 : i32
    %c0_i32_1 = arith.constant 0 : i32
    return %arg0, %c0_i32, %c0_i32_0 : i32, i32, i32
  }
}

</mosaic_0001>

<llo_original>
// kernel: tpu_custom_call.1
$region0: #{tpu_custom_call.1}
  #allocation0 [shape = 'u32[]', space=smem, size = 0x4, offset = 0x4, fixed_abs, tag = 'smem constant byte address 0x4 - core index']
  #allocation1 [shape = 'u32[144,128]{1,0:T(1,128)}', space=vmem, size = 0x12000, scoped, tag = 'internal scratch']
  #allocation2 [shape = 'f32[8,512]{1,0:T(8,128)}', space=vmem, size = 0x4000, scoped, tag = 'scratch operand']
  %s0 = inlined_call_operand.hbm [shape: f32[1,512], index: 0, kind: input, shape index: {}]
  %s1 = inlined_call_operand.hbm [shape: f32[1,512], index: 1, kind: input, shape index: {}]
  %s2 = inlined_call_operand.hbm [shape: f32[1,8,128], index: 2, kind: output, shape index: {}]
  %s3 = sld [smem:[#allocation0]]
  $region34: #{tpu_custom_call.1} parent=0
    _
  %s5 = ssub.s32 1, %s3
  %s6 = scalar_select 0, %s5, %s3
  $region1: #{tpu_custom_call.1} parent=0
    #allocation3 [shape = 'u8[16384]{0}', space=vmem, size = 0x4000, scoped, tag = 'input window, operand 0, single buffered']
    #allocation4 [shape = 's32[1]{0}', space=sflag, size = 0x4, scoped, tag = 'scoped memory for tpu_custom_call.1']
    #allocation5 [shape = 's32[1]{0}', space=sflag, size = 0x4, scoped, tag = 'scoped memory for tpu_custom_call.1']
    #allocation6 [shape = 'u8[16384]{0}', space=vmem, size = 0x4000, scoped, tag = 'input window, operand 1, single buffered']
    #allocation7 [shape = 's32[1]{0}', space=sflag, size = 0x4, scoped, tag = 'scoped memory for tpu_custom_call.1']
    #allocation8 [shape = 'u8[4096]{0}', space=vmem, size = 0x1000, scoped, tag = 'output window, operand 0, single buffered']
    %7 = vsyncpa [#allocation4], 0
    %8 = vsyncpa [#allocation7], 0
    %9 = vsyncpa [#allocation5], 0
    // Predicated region
    $region2: #{tpu_custom_call.1} parent=1 // pred_check
      _
    $region3: #{tpu_custom_call.1} parent=1 // pred_check_branch
      %11 = sbr.rel (0) target = $region5
    $region4: #{tpu_custom_call.1} parent=1 // pred_region
      %s12 = sadd.s32 0, 0
      %p13 = scmp.lt.s32.totalorder %s12, 0
      %s14 = scalar_select %p13, %s12, 0
      %s15 = smul.u32 8, %s14
      %s16 = ssub.s32 1, %s15
      %s17 = smul.u32 16, %s16
      %s18 = smul.u32 %s17, 4
      %s20 = ssub.s32 512, %s18
      %21 = vsyncadd [#allocation4], %s20
      %p22 = scmp.ne.s32.totalorder 0, %s18
      %s23 = smul.addr %s15, 4
      %s24 = smul.addr %s23, 16
      %s25 = scalar_lea.hbm %s0, %s24
      %s26 = smul.u32 4, %s16
      %s27 = sshll.u32 [#allocation3], 4
      %s28 = int_to_ptr.vmem [resolvable:$true] %s27
      %s29 = sshll.u32 %s26, 4
      %33 = dma.hbm_to_vmem [thread:$0]  (%p22), %s25, %s29, %s28, [#allocation4], 64, 64, 4
    $region5: #{tpu_custom_call.1} parent=1 // pred_fallthru
      _
    // Predicated region
    $region6: #{tpu_custom_call.1} parent=1 // pred_check
      _
    $region7: #{tpu_custom_call.1} parent=1 // pred_check_branch
      %35 = sbr.rel (0) target = $region9
    $region8: #{tpu_custom_call.1} parent=1 // pred_region
      %s36 = sadd.s32 0, 0
      %p37 = scmp.lt.s32.totalorder %s36, 0
      %s38 = scalar_select %p37, %s36, 0
      %s39 = smul.u32 8, %s38
      %s40 = ssub.s32 1, %s39
      %s41 = smul.u32 16, %s40
      %s42 = smul.u32 %s41, 4
      %s44 = ssub.s32 512, %s42
      %45 = vsyncadd [#allocation7], %s44
      %p46 = scmp.ne.s32.totalorder 0, %s42
      %s47 = smul.addr %s39, 4
      %s48 = smul.addr %s47, 16
      %s49 = scalar_lea.hbm %s1, %s48
      %s50 = smul.u32 4, %s40
      %s51 = sshll.u32 [#allocation6], 4
      %s52 = int_to_ptr.vmem [resolvable:$true] %s51
      %s53 = sshll.u32 %s50, 4
      %57 = dma.hbm_to_vmem [thread:$0]  (%p46), %s49, %s53, %s52, [#allocation7], 64, 64, 4
    $region9: #{tpu_custom_call.1} parent=1 // pred_fallthru
      _
    // Predicated region
    $region10: #{tpu_custom_call.1} parent=1 // pred_check
      _
    $region11: #{tpu_custom_call.1} parent=1 // pred_check_branch
      %59 = sbr.rel (0) target = $region13
    $region12: #{tpu_custom_call.1} parent=1 // pred_region
      %60 = dma.done [#allocation4], 512
    $region13: #{tpu_custom_call.1} parent=1 // pred_fallthru
      _
    // Predicated region
    $region14: #{tpu_custom_call.1} parent=1 // pred_check
      _
    $region15: #{tpu_custom_call.1} parent=1 // pred_check_branch
      %62 = sbr.rel (0) target = $region17
    $region16: #{tpu_custom_call.1} parent=1 // pred_region
      %63 = dma.done [#allocation7], 512
    $region17: #{tpu_custom_call.1} parent=1 // pred_fallthru
      _
    %s64 = sadd.s32 0, 0
    %p65 = scmp.lt.s32.totalorder %s64, 0
    %s66 = scalar_select %p65, %s64, 0
    %s67 = smul.u32 8, %s66
    %s68 = ssub.s32 1, %s67
    %s69 = smul.u32 16, %s68
    %s70 = smul.u32 %s69, 4
    %s71 = sadd.s32 0, 0
    %p72 = scmp.lt.s32.totalorder %s71, 0
    %s73 = scalar_select %p72, %s71, 0
    %s74 = smul.u32 8, %s73
    %s75 = ssub.s32 1, %s74
    %s76 = smul.u32 16, %s75
    %s77 = smul.u32 %s76, 4
    %p78 = scmp.eq.s32.totalorder 0, 0
    // Predicated region
    $region18: #{tpu_custom_call.1} parent=1 // pred_check
      %p79 = pneg %p78
    $region19: #{tpu_custom_call.1} parent=1 // pred_check_branch
      %81 = sbr.rel (%p79) target = $region21
    $region20: #{tpu_custom_call.1} parent=1 // pred_region
      %82 = vst [vmem:[#allocation2] sm:$0xff] 0.0
      %83 = vst [vmem:[#allocation2 + $0x8] sm:$0xff] 0.0
      %84 = vst [vmem:[#allocation2 + $0x10] sm:$0xff] 0.0
      %85 = vst [vmem:[#allocation2 + $0x18] sm:$0xff] 0.0
    $region21: #{tpu_custom_call.1} parent=1 // pred_fallthru
      _
    %s86 = sadd.s32 0, 0
    %s87 = smul.u32 %s86, 8
    %s88 = smul.u32 0, 4
    %s89 = scalar_lea.vmem [#allocation3], %s88
    %v90 = vld [vmem:[%s89] sm:$0xf]
    %v91 = vld [vmem:[%s89 + $0x4] sm:$0xf]
    %v92 = vld [vmem:[%s89 + $0x8] sm:$0xf]
    %v93 = vld [vmem:[%s89 + $0xc] sm:$0xf]
    %v94 = vld [vmem:[%s89 + $0x10] sm:$0xf]
    %v95 = vld [vmem:[%s89 + $0x14] sm:$0xf]
    %v96 = vld [vmem:[%s89 + $0x18] sm:$0xf]
    %v97 = vld [vmem:[%s89 + $0x1c] sm:$0xf]
    %s98 = scalar_lea.vmem [#allocation6], %s88
    %v99 = vld [vmem:[%s98] sm:$0xf]
    %v100 = vld [vmem:[%s98 + $0x4] sm:$0xf]
    %v101 = vld [vmem:[%s98 + $0x8] sm:$0xf]
    %v102 = vld [vmem:[%s98 + $0xc] sm:$0xf]
    %v103 = vld [vmem:[%s98 + $0x10] sm:$0xf]
    %v104 = vld [vmem:[%s98 + $0x14] sm:$0xf]
    %v105 = vld [vmem:[%s98 + $0x18] sm:$0xf]
    %v106 = vld [vmem:[%s98 + $0x1c] sm:$0xf]
    %v107 = vsub.f32 %v90, %v99
    %v108 = vsub.f32 %v91, %v100
    %v109 = vsub.f32 %v92, %v101
    %v110 = vsub.f32 %v93, %v102
    %v111 = vsub.f32 %v94, %v103
    %v112 = vsub.f32 %v95, %v104
    %v113 = vsub.f32 %v96, %v105
    %v114 = vsub.f32 %v97, %v106
    %v115 = vmul.f32 %v107, %v107
    %v116 = vmul.f32 %v108, %v108
    %v117 = vmul.f32 %v109, %v109
    %v118 = vmul.f32 %v110, %v110
    %v119 = vmul.f32 %v111, %v111
    %v120 = vmul.f32 %v112, %v112
    %v121 = vmul.f32 %v113, %v113
    %v122 = vmul.f32 %v114, %v114
    %v123 = vsub.f32 0.0, %v115
    %v124 = vsub.f32 0.0, %v116
    %v125 = vsub.f32 0.0, %v117
    %v126 = vsub.f32 0.0, %v118
    %v127 = vsub.f32 0.0, %v119
    %v128 = vsub.f32 0.0, %v120
    %v129 = vsub.f32 0.0, %v121
    %v130 = vsub.f32 0.0, %v122
    %v131 = vmul.f32 %v123, 1.442695
    %v132 = vpow.pop %v131
    %v133 = vmul.f32 %v124, 1.442695
    %v134 = vpow.pop %v133
    %v135 = vmul.f32 %v125, 1.442695
    %v136 = vpow.pop %v135
    %v137 = vmul.f32 %v126, 1.442695
    %v138 = vpow.pop %v137
    %v139 = vmul.f32 %v127, 1.442695
    %v140 = vpow.pop %v139
    %v141 = vmul.f32 %v128, 1.442695
    %v142 = vpow.pop %v141
    %v143 = vmul.f32 %v129, 1.442695
    %v144 = vpow.pop %v143
    %v145 = vmul.f32 %v130, 1.442695
    %v146 = vpow.pop %v145
    %v147 = vsub.f32 1.0, %v132
    %v148 = vsub.f32 1.0, %v134
    %v149 = vsub.f32 1.0, %v136
    %v150 = vsub.f32 1.0, %v138
    %v151 = vsub.f32 1.0, %v140
    %v152 = vsub.f32 1.0, %v142
    %v153 = vsub.f32 1.0, %v144
    %v154 = vsub.f32 1.0, %v146
    %v155 = vmul.f32 %v147, %v147
    %v156 = vmul.f32 %v148, %v148
    %v157 = vmul.f32 %v149, %v149
    %v158 = vmul.f32 %v150, %v150
    %v159 = vmul.f32 %v151, %v151
    %v160 = vmul.f32 %v152, %v152
    %v161 = vmul.f32 %v153, %v153
    %v162 = vmul.f32 %v154, %v154
    %v163 = vmul.f32 %v155, %v115
    %v164 = vmul.f32 %v156, %v116
    %v165 = vmul.f32 %v157, %v117
    %v166 = vmul.f32 %v158, %v118
    %v167 = vmul.f32 %v159, %v119
    %v168 = vmul.f32 %v160, %v120
    %v169 = vmul.f32 %v161, %v121
    %v170 = vmul.f32 %v162, %v122
    %v171 = vlaneseq
    %v172 = vshrl.u32 %v171, 7
    %v173 = vstv %s87
    %v174 = vadd.s32 %v172, %v173
    %v175 = vstv 0
    %v176 = vadd.s32 %v174, %v175
    %vm177 = vcmp.lt.s32.totalorder %v176, 1
    %v186 = vcombine.low %v163, %v164
    %v187 = vcombine.low %v165, %v166
    %v188 = vcombine.low %v167, %v168
    %v189 = vcombine.low %v169, %v170
    %v191 = vunpack.c.l.s4 1966171168
    %v192 = vunpack.c.0.s8 %v191
    %v193 = vlaneseq
    %v194 = vshrl.u32 %v193, 7
    %v195 = vsub.s32 %v192, %v194
    %v196 = vrot.slane %v186, %v195
    %v198 = vunpack.c.l.s4 1966171168
    %v199 = vunpack.c.0.s8 %v198
    %v200 = vlaneseq
    %v201 = vshrl.u32 %v200, 7
    %v202 = vsub.s32 %v199, %v201
    %v203 = vrot.slane %v187, %v202
    %v205 = vunpack.c.l.s4 1966171168
    %v206 = vunpack.c.0.s8 %v205
    %v207 = vlaneseq
    %v208 = vshrl.u32 %v207, 7
    %v209 = vsub.s32 %v206, %v208
    %v210 = vrot.slane %v188, %v209
    %v212 = vunpack.c.l.s4 1966171168
    %v213 = vunpack.c.0.s8 %v212
    %v214 = vlaneseq
    %v215 = vshrl.u32 %v214, 7
    %v216 = vsub.s32 %v213, %v215
    %v217 = vrot.slane %v189, %v216
    %v218 = vcombine.low %v196, %v203
    %v219 = vcombine.high %v196, %v203
    %v220 = vcombine.low %v210, %v217
    %v221 = vcombine.high %v210, %v217
    %v223 = vunpack.c.l.s4 1966171168
    %v224 = vunpack.c.0.s8 %v223
    %v225 = vlaneseq
    %v226 = vshrl.u32 %v225, 7
    %v227 = vsub.s32 %v224, %v226
    %v228 = vrot.slane %v218, %v227
    %v230 = vunpack.c.l.s4 1966171168
    %v231 = vunpack.c.0.s8 %v230
    %v232 = vlaneseq
    %v233 = vshrl.u32 %v232, 7
    %v234 = vsub.s32 %v231, %v233
    %v235 = vrot.slane %v219, %v234
    %v237 = vunpack.c.l.s4 1966171168
    %v238 = vunpack.c.0.s8 %v237
    %v239 = vlaneseq
    %v240 = vshrl.u32 %v239, 7
    %v241 = vsub.s32 %v238, %v240
    %v242 = vrot.slane %v220, %v241
    %v244 = vunpack.c.l.s4 1966171168
    %v245 = vunpack.c.0.s8 %v244
    %v246 = vlaneseq
    %v247 = vshrl.u32 %v246, 7
    %v248 = vsub.s32 %v245, %v247
    %v249 = vrot.slane %v221, %v248
    %v250 = vcombine.low %v228, %v242
    %v251 = vcombine.high %v228, %v242
    %v252 = vcombine.low %v235, %v249
    %v253 = vcombine.high %v235, %v249
    %v258 = vsel %vm177, %v250, 0.0
    %v259 = vsel %vm177, %v252, 0.0
    %v260 = vsel %vm177, %v251, 0.0
    %v261 = vsel %vm177, %v253, 0.0
    %v262 = vld [vmem:[#allocation2] sm:$0xff]
    %v263 = vld [vmem:[#allocation2 + $0x8] sm:$0xff]
    %v264 = vld [vmem:[#allocation2 + $0x10] sm:$0xff]
    %v265 = vld [vmem:[#allocation2 + $0x18] sm:$0xff]
    %v266 = vadd.f32 %v262, %v258
    %v267 = vadd.f32 %v263, %v259
    %v268 = vadd.f32 %v264, %v260
    %v269 = vadd.f32 %v265, %v261
    %270 = vst [vmem:[#allocation2] sm:$0xff] %v266
    %271 = vst [vmem:[#allocation2 + $0x8] sm:$0xff] %v267
    %272 = vst [vmem:[#allocation2 + $0x10] sm:$0xff] %v268
    %273 = vst [vmem:[#allocation2 + $0x18] sm:$0xff] %v269
    // Predicated region
    $region22: #{tpu_custom_call.1} parent=1 // pred_check
      %p274 = pneg %p78
    $region23: #{tpu_custom_call.1} parent=1 // pred_check_branch
      %276 = sbr.rel (%p274) target = $region25
    $region24: #{tpu_custom_call.1} parent=1 // pred_region
      %v277 = vld [vmem:[#allocation2] sm:$0xff]
      %v278 = vld [vmem:[#allocation2 + $0x8] sm:$0xff]
      %v279 = vld [vmem:[#allocation2 + $0x10] sm:$0xff]
      %v280 = vld [vmem:[#allocation2 + $0x18] sm:$0xff]
      %v281 = vadd.f32 %v277, %v278
      %v282 = vadd.f32 %v281, %v279
      %v283 = vadd.f32 %v282, %v280
      %284 = vadd.xlane.f32.xlu0 %v283
      %v285 = vpop.xlane.xlu0 %284
      %v286 = vrot.slane %v285, 4
      %v287 = vadd.f32 %v285, %v286
      %v288 = vrot.slane %v287, 2
      %v289 = vadd.f32 %v287, %v288
      %v290 = vrot.slane %v289, 1
      %v291 = vadd.f32 %v289, %v290
      %s292 = vtos %v291
      %v293 = vstv %s292
      %294 = vst [vmem:[#allocation8] sm:$0xff] %v293
    $region25: #{tpu_custom_call.1} parent=1 // pred_fallthru
      _
    // Predicated region
    $region26: #{tpu_custom_call.1} parent=1 // pred_check
      _
    $region27: #{tpu_custom_call.1} parent=1 // pred_check_branch
      %296 = sbr.rel (0) target = $region29
    $region28: #{tpu_custom_call.1} parent=1 // pred_region
      %s298 = ssub.s32 128, 128
      %299 = vsyncadd [#allocation5], %s298
      %s301 = sshll.u32 [#allocation8], 4
      %s302 = int_to_ptr.vmem [resolvable:$true] %s301
      %304 = dma.vmem_to_hbm [thread:$0]  %s302, 128, %s2, [#allocation5]
    $region29: #{tpu_custom_call.1} parent=1 // pred_fallthru
      _
    // Predicated region
    $region30: #{tpu_custom_call.1} parent=1 // pred_check
      _
    $region31: #{tpu_custom_call.1} parent=1 // pred_check_branch
      %306 = sbr.rel (0) target = $region33
    $region32: #{tpu_custom_call.1} parent=1 // pred_region
      %307 = dma.done [#allocation5], 128
    $region33: #{tpu_custom_call.1} parent=1 // pred_fallthru
      _
    %308 = vsyncpa [#allocation4], 1
    %309 = vsyncpa [#allocation7], 1
    %310 = vsyncpa [#allocation5], 1

</llo_original>
